<compile_context>
chip_gen: v7x
topology: tpu7x:2x2x1
jax: 0.10.0
libtpu: 0.0.40
codegen_flags: <defaults>
</compile_context>

<pallas_src>
import jax
import jax.numpy as jnp
from jax.experimental import pallas as pl
from jax.experimental.pallas import tpu as pltpu

_TARGET_BLOCK_BYTES = 2 * 1024 * 1024  # per-block footprint target (v5e..v7x safe)


# ---------------------------------------------------------------------------
# block-size helpers
# ---------------------------------------------------------------------------
def _largest_divisor(n, cap):
    best = 1
    for d in range(1, n + 1):
        if n % d == 0 and d <= cap:
            best = d
    return best


def _pick_c_block(c, bytes_per_c, target_bytes):
    """c-block must divide c and be a multiple of 8 (sublane tile), or be c itself."""
    if c * bytes_per_c <= target_bytes:
        return c
    best = None
    for d in range(8, c, 8):
        if c % d == 0 and d * bytes_per_c <= target_bytes:
            best = d
    return best if best is not None else c


def _pick_n_block(n, bytes_per_n, target_bytes):
    cap = max(1, target_bytes // max(1, bytes_per_n))
    return _largest_divisor(n, cap)


def _pick_blocks(n, c, tv, itemsize, target_bytes=_TARGET_BLOCK_BYTES):
    bytes_per_c = tv * itemsize
    bc = _pick_c_block(c, bytes_per_c, target_bytes)
    bn = _pick_n_block(n, bc * bytes_per_c, target_bytes)
    return bn, bc


# ---------------------------------------------------------------------------
# Pass 1: sum(|x|) over the channel axis  ->  (n, t*v)  (lane-dense)
# ---------------------------------------------------------------------------
def _abs_sum_kernel(x_ref, s_ref):
    # x_ref: (bn, bc, TV); s_ref: (bn, 1, TV), resident across the reduction axis.
    @pl.when(pl.program_id(1) == 0)
    def _init():
        s_ref[...] = jnp.zeros_like(s_ref)

    x = x_ref[...]
    s_ref[...] += jnp.sum(jnp.abs(x).astype(jnp.float32), axis=1, keepdims=True)


def _abs_sum_c(x_flat):
    n, c, tv = x_flat.shape
    bn, bc = _pick_blocks(n, c, tv, x_flat.dtype.itemsize)
    grid = (n // bn, c // bc)

    out = pl.pallas_call(
        _abs_sum_kernel,
        out_shape=jax.ShapeDtypeStruct((n, 1, tv), jnp.float32),
        grid=grid,
        in_specs=[pl.BlockSpec((bn, bc, tv), lambda i, k: (i, k, 0))],
        out_specs=pl.BlockSpec((bn, 1, tv), lambda i, k: (i, 0, 0)),
        compiler_params=pltpu.CompilerParams(
            dimension_semantics=("parallel", "arbitrary")),
    )(x_flat)
    return out[:, 0, :]  # (n, t*v): sum of |x| over c


# ---------------------------------------------------------------------------
# Tiny glue on the (n, t) statistics: normalize, Bernoulli, max-pool, rescale.
# ---------------------------------------------------------------------------
def _build_mask_row(abs_sum_ntv, shape, keep_prob, block_size, seed, dtype):
    n, c, t, v = shape
    tiny = jnp.finfo(jnp.float32).tiny

    # finish reduction: sum over v, then mean over (c, v)
    abs_sum_nt = jnp.sum(abs_sum_ntv.reshape(n, t, v), axis=2)          # (n, t)
    input_abs = abs_sum_nt / jnp.float32(c * v)                          # mean over (c, v)
    total = jnp.sum(input_abs)
    # degenerate all-zero input guard (torch would emit NaN/Inf here)
    input_abs = input_abs / jnp.maximum(total, tiny) * jnp.float32(n * t)

    gamma = jnp.float32((1.0 - keep_prob) / block_size)
    p = jnp.minimum(input_abs * gamma, 1.0)

    # TODO(synk): statistically equivalent Bernoulli; not bit-exact vs torch.bernoulli RNG stream.
    m = jax.random.bernoulli(jax.random.PRNGKey(seed), p).astype(jnp.float32)  # (n, t)

    pad = block_size // 2
    msum = jax.lax.reduce_window(
        m, jnp.float32(-jnp.inf), jax.lax.max,
        window_dimensions=(1, block_size), window_strides=(1, 1),
        padding=((0, 0), (pad, pad)))
    mask = 1.0 - msum                                                    # (n, t)

    mask_sum = jnp.sum(mask) * jnp.float32(c * v)   # torch sums the (n, c*v, t) mask
    scale = jnp.float32(n * c * v * t) / jnp.maximum(mask_sum, tiny)
    mask_scaled = (mask * scale).astype(dtype)                           # (n, t)

    # repeat across V so the apply pass stays lane-dense over the fused T*V axis
    return jnp.repeat(mask_scaled, v, axis=1).reshape(n, 1, t * v)


# ---------------------------------------------------------------------------
# Pass 2: out = x * mask_row   (lane-dense, fully parallel, DMA-bound)
# ---------------------------------------------------------------------------
def _apply_kernel(x_ref, m_ref, o_ref):
    # x_ref: (bn, bc, TV); m_ref: (bn, 1, TV) broadcast over the channel axis.
    o_ref[...] = x_ref[...] * m_ref[...]


def _apply_mask(x_flat, mask_row):
    n, c, tv = x_flat.shape
    bn, bc = _pick_blocks(n, c, tv, x_flat.dtype.itemsize)
    grid = (n // bn, c // bc)

    return pl.pallas_call(
        _apply_kernel,
        out_shape=jax.ShapeDtypeStruct((n, c, tv), x_flat.dtype),
        grid=grid,
        in_specs=[
            pl.BlockSpec((bn, bc, tv), lambda i, j: (i, j, 0)),
            pl.BlockSpec((bn, 1, tv), lambda i, j: (i, 0, 0)),
        ],
        out_specs=pl.BlockSpec((bn, bc, tv), lambda i, j: (i, j, 0)),
        compiler_params=pltpu.CompilerParams(
            dimension_semantics=("parallel", "parallel")),
    )(x_flat, mask_row)


# ---------------------------------------------------------------------------
# Public wrapper (mirrors DropBlockT_1d.forward)
# ---------------------------------------------------------------------------
def drop_block_t_1d(x, keep_prob, seed=0, block_size=7, training=True):
    """x: (n, c, t, v). Returns (n, c, t, v)."""
    if (not training) or keep_prob == 1.0:
        return x
    n, c, t, v = x.shape
    x_flat = x.reshape(n, c, t * v)                                     # free reshape
    abs_sum = _abs_sum_c(x_flat)                                        # Pallas pass 1
    mask_row = _build_mask_row(abs_sum, (n, c, t, v), keep_prob,
                               block_size, seed, x.dtype)               # tiny glue
    out_flat = _apply_mask(x_flat, mask_row)                            # Pallas pass 2
    return out_flat.reshape(n, c, t, v)


if __name__ == "__main__":
    key = jax.random.PRNGKey(0)
    n, c, t, v = 2, 4, 16, 16                       # (batch, channels, time, joints)
    x = jax.random.normal(key, (n, c, t, v), dtype=jnp.float32)

    out = jax.block_until_ready(
        drop_block_t_1d(x, keep_prob=0.9, seed=0, block_size=7, training=True))
    assert out.shape == x.shape and out.dtype == x.dtype
    assert bool(jnp.all(jnp.isfinite(out)))

    # Pass-1 correctness: Pallas channel reduction vs plain-JAX reduction.
    x_flat = x.reshape(n, c, t * v)
    abs_sum = jax.block_until_ready(_abs_sum_c(x_flat))
    abs_sum_ref = jnp.sum(jnp.abs(x_flat), axis=1)
    assert bool(jnp.allclose(abs_sum, abs_sum_ref, rtol=1e-5, atol=1e-5))

    # Full (n, t) statistic matches mean(|x|, dims (c, v)).
    stat = jnp.sum(abs_sum.reshape(n, t, v), axis=2) / (c * v)
    stat_ref = jnp.mean(jnp.abs(x), axis=(1, 3))
    assert bool(jnp.allclose(stat, stat_ref, rtol=1e-5, atol=1e-5))

    # Pass-2 correctness: Pallas apply vs plain-JAX apply of the identical mask.
    mask_row = _build_mask_row(abs_sum, (n, c, t, v), 0.9, 7, 0, x.dtype)
    out_ref = (x_flat * mask_row).reshape(n, c, t, v)
    assert bool(jnp.allclose(out, out_ref, rtol=1e-5, atol=1e-6))

    # eval / keep_prob == 1 path returns the input untouched.
    out_eval = jax.block_until_ready(drop_block_t_1d(x, keep_prob=1.0))
    assert bool(jnp.all(out_eval == x))

    print("KERNEL_OK")
</pallas_src>

<mosaic_0001>
module attributes {stable_mosaic.version = 11 : i64} {
  func.func @_abs_sum_kernel(%arg0: i32, %arg1: i32, %arg2: memref<2x4x256xf32, #tpu.memory_space<vmem>>, %arg3: memref<2x1x256xf32, #tpu.memory_space<vmem>>) attributes {dimension_semantics = [#tpu.dimension_semantics<parallel>, #tpu.dimension_semantics<arbitrary>], iteration_bounds = array<i64: 1, 1>, scalar_prefetch = 0 : i64, scratch_operands = 0 : i64, tpu.core_type = #tpu.core_type<tc>, window_params = [{transform_indices = @transform_0, window_bounds = array<i64: 2, 4, 256>}, {transform_indices = @transform_1, window_bounds = array<i64: 2, 1, 256>}]} {
    %c0_i32 = arith.constant 0 : i32
    %0 = arith.cmpi eq, %arg1, %c0_i32 : i32
    %1 = arith.extui %0 : i1 to i32
    %c0_i32_0 = arith.constant 0 : i32
    %2 = arith.cmpi ne, %1, %c0_i32_0 : i32
    scf.if %2 {
      %cst_9 = arith.constant 0.000000e+00 : f32
      %10 = vector.broadcast %cst_9 : f32 to vector<2x1x256xf32>
      %c0_10 = arith.constant 0 : index
      %c0_11 = arith.constant 0 : index
      %c0_12 = arith.constant 0 : index
      %11 = vector.load %arg3[%c0_10, %c0_11, %c0_12] : memref<2x1x256xf32, #tpu.memory_space<vmem>>, vector<2x1x256xf32>
      tpu.vector_store %arg3[%c0_10, %c0_11, %c0_12], %10 {strides = array<i32>} : memref<2x1x256xf32, #tpu.memory_space<vmem>>, vector<2x1x256xf32>,
    } else {
    }
    %c0 = arith.constant 0 : index
    %c0_1 = arith.constant 0 : index
    %c0_2 = arith.constant 0 : index
    %3 = vector.load %arg2[%c0, %c0_1, %c0_2] : memref<2x4x256xf32, #tpu.memory_space<vmem>>, vector<2x4x256xf32>
    %c0_3 = arith.constant 0 : index
    %c0_4 = arith.constant 0 : index
    %c0_5 = arith.constant 0 : index
    %4 = vector.load %arg3[%c0_3, %c0_4, %c0_5] : memref<2x1x256xf32, #tpu.memory_space<vmem>>, vector<2x1x256xf32>
    %5 = math.absf %3 : vector<2x4x256xf32>
    %cst = arith.constant dense<0.000000e+00> : vector<2x256xf32>
    %6 = vector.multi_reduction <add>, %5, %cst [1] : vector<2x4x256xf32> to vector<2x256xf32>
    %7 = vector.shape_cast %6 : vector<2x256xf32> to vector<2x1x256xf32>
    %8 = arith.addf %4, %7 : vector<2x1x256xf32>
    %c0_6 = arith.constant 0 : index
    %c0_7 = arith.constant 0 : index
    %c0_8 = arith.constant 0 : index
    %9 = vector.load %arg3[%c0_6, %c0_7, %c0_8] : memref<2x1x256xf32, #tpu.memory_space<vmem>>, vector<2x1x256xf32>
    tpu.vector_store %arg3[%c0_6, %c0_7, %c0_8], %8 {strides = array<i32>} : memref<2x1x256xf32, #tpu.memory_space<vmem>>, vector<2x1x256xf32>,
    return
  }
  func.func @transform_0(%arg0: i32, %arg1: i32) -> (i32, i32, i32) {
    %c0_i32 = arith.constant 0 : i32
    %c0_i32_0 = arith.constant 0 : i32
    return %arg0, %arg1, %c0_i32 : i32, i32, i32
  }
  func.func @transform_1(%arg0: i32, %arg1: i32) -> (i32, i32, i32) {
    %c0_i32 = arith.constant 0 : i32
    %c0_i32_0 = arith.constant 0 : i32
    %c0_i32_1 = arith.constant 0 : i32
    return %arg0, %c0_i32, %c0_i32_0 : i32, i32, i32
  }
}

</mosaic_0001>

<llo_original>
// kernel: tpu_custom_call.1
$region0: #{tpu_custom_call.1}
  #allocation0 [shape = 'u32[]', space=smem, size = 0x4, offset = 0x4, fixed_abs, tag = 'smem constant byte address 0x4 - core index']
  #allocation1 [shape = 'u32[144,128]{1,0:T(1,128)}', space=vmem, size = 0x12000, scoped, tag = 'internal scratch']
  %s0 = inlined_call_operand.hbm [shape: f32[2,4,256], index: 0, kind: input, shape index: {}]
  %s1 = inlined_call_operand.hbm [shape: f32[2,1,256], index: 1, kind: output, shape index: {}]
  %s2 = sld [smem:[#allocation0]]
  $region22: #{tpu_custom_call.1} parent=0
    _
  %s4 = ssub.s32 1, %s2
  %s5 = scalar_select 0, %s4, %s2
  $region1: #{tpu_custom_call.1} parent=0
    #allocation2 [shape = 'u8[8192]{0}', space=vmem, size = 0x2000, scoped, tag = 'input window, operand 0, single buffered']
    #allocation3 [shape = 's32[1]{0}', space=sflag, size = 0x4, scoped, tag = 'scoped memory for tpu_custom_call.1']
    #allocation4 [shape = 's32[1]{0}', space=sflag, size = 0x4, scoped, tag = 'scoped memory for tpu_custom_call.1']
    #allocation5 [shape = 'u8[2048]{0}', space=vmem, size = 0x800, scoped, tag = 'output window, operand 0, single buffered']
    %6 = vsyncpa [#allocation3], 0
    %7 = vsyncpa [#allocation4], 0
    // Predicated region
    $region2: #{tpu_custom_call.1} parent=1 // pred_check
      _
    $region3: #{tpu_custom_call.1} parent=1 // pred_check_branch
      %9 = sbr.rel (0) target = $region5
    $region4: #{tpu_custom_call.1} parent=1 // pred_region
      %s11 = ssub.s32 256, 256
      %12 = vsyncadd [#allocation3], %s11
      %s13 = sshll.u32 [#allocation2], 4
      %s14 = int_to_ptr.vmem [resolvable:$true] %s13
      %19 = dma.hbm_to_vmem [thread:$0]  %s0, 256, %s14, [#allocation3], 128, 128, 8
    $region5: #{tpu_custom_call.1} parent=1 // pred_fallthru
      _
    // Predicated region
    $region6: #{tpu_custom_call.1} parent=1 // pred_check
      _
    $region7: #{tpu_custom_call.1} parent=1 // pred_check_branch
      %21 = sbr.rel (0) target = $region9
    $region8: #{tpu_custom_call.1} parent=1 // pred_region
      %22 = dma.done [#allocation3], 256
    $region9: #{tpu_custom_call.1} parent=1 // pred_fallthru
      _
    %p23 = scmp.eq.s32.totalorder 0, 0
    // Predicated region
    $region10: #{tpu_custom_call.1} parent=1 // pred_check
      %p24 = pneg %p23
    $region11: #{tpu_custom_call.1} parent=1 // pred_check_branch
      %26 = sbr.rel (%p24) target = $region13
    $region12: #{tpu_custom_call.1} parent=1 // pred_region
      %v27 = vlaneseq
      %vm28 = vcmp.ge.s32.totalorder %v27, 0
      %vm29 = vcmp.lt.s32.totalorder %v27, 256
      %vm30 = vmand %vm28, %vm29
      %31 = vst.msk [vmem:[#allocation5] sm:$0x3] %vm30, 0.0
      %32 = vst.msk [vmem:[#allocation5 + $0x2] sm:$0x3] %vm30, 0.0
    $region13: #{tpu_custom_call.1} parent=1 // pred_fallthru
      _
    %v33 = vld [vmem:[#allocation2] sm:$0xff]
    %v34 = vld [vmem:[#allocation2 + $0x8] sm:$0xff]
    %v35 = vld [vmem:[#allocation5] sm:$0x3]
    %v36 = vld [vmem:[#allocation5 + $0x2] sm:$0x3]
    %v37 = vand.u32 2147483647, %v33
    %v38 = vand.u32 2147483647, %v34
    %v41 = vcombine.high %v37, %v37
    %v42 = vcombine.high %v38, %v38
    %vm45 = vcmask 1043456
    %v46 = vsel %vm45, %v37, 0.0
    %v47 = vrot.slane %v46, 4
    %v48 = vadd.f32 %v46, %v47
    %v49 = vrot.slane %v48, 2
    %v50 = vadd.f32 %v48, %v49
    %v51 = vrot.slane %v50, 1
    %v52 = vadd.f32 %v50, %v51
    %v53 = vsel %vm45, %v41, 0.0
    %v54 = vrot.slane %v53, 4
    %v55 = vadd.f32 %v53, %v54
    %v56 = vrot.slane %v55, 2
    %v57 = vadd.f32 %v55, %v56
    %v58 = vrot.slane %v57, 1
    %v59 = vadd.f32 %v57, %v58
    %v60 = vsel %vm45, %v38, 0.0
    %v61 = vrot.slane %v60, 4
    %v62 = vadd.f32 %v60, %v61
    %v63 = vrot.slane %v62, 2
    %v64 = vadd.f32 %v62, %v63
    %v65 = vrot.slane %v64, 1
    %v66 = vadd.f32 %v64, %v65
    %v67 = vsel %vm45, %v42, 0.0
    %v68 = vrot.slane %v67, 4
    %v69 = vadd.f32 %v67, %v68
    %v70 = vrot.slane %v69, 2
    %v71 = vadd.f32 %v69, %v70
    %v72 = vrot.slane %v71, 1
    %v73 = vadd.f32 %v71, %v72
    %v78 = vcombine.low %v52, %v59
    %v80 = vunpack.c.l.s4 1966171168
    %v81 = vunpack.c.0.s8 %v80
    %v82 = vlaneseq
    %v83 = vshrl.u32 %v82, 7
    %v84 = vsub.s32 %v81, %v83
    %v85 = vrot.slane %v78, %v84
    %v87 = vunpack.c.l.s4 1966171168
    %v88 = vunpack.c.0.s8 %v87
    %v89 = vlaneseq
    %v90 = vshrl.u32 %v89, 7
    %v91 = vsub.s32 %v88, %v90
    %v92 = vrot.slane %v85, %v91
    %v93 = vcombine.low %v66, %v73
    %v95 = vunpack.c.l.s4 1966171168
    %v96 = vunpack.c.0.s8 %v95
    %v97 = vlaneseq
    %v98 = vshrl.u32 %v97, 7
    %v99 = vsub.s32 %v96, %v98
    %v100 = vrot.slane %v93, %v99
    %v102 = vunpack.c.l.s4 1966171168
    %v103 = vunpack.c.0.s8 %v102
    %v104 = vlaneseq
    %v105 = vshrl.u32 %v104, 7
    %v106 = vsub.s32 %v103, %v105
    %v107 = vrot.slane %v100, %v106
    %v110 = vadd.f32 %v35, %v92
    %v111 = vadd.f32 %v36, %v107
    %v112 = vlaneseq
    %vm113 = vcmp.ge.s32.totalorder %v112, 0
    %vm114 = vcmp.lt.s32.totalorder %v112, 256
    %vm115 = vmand %vm113, %vm114
    %116 = vst.msk [vmem:[#allocation5] sm:$0x3] %vm115, %v110
    %117 = vst.msk [vmem:[#allocation5 + $0x2] sm:$0x3] %vm115, %v111
    // Predicated region
    $region14: #{tpu_custom_call.1} parent=1 // pred_check
      _
    $region15: #{tpu_custom_call.1} parent=1 // pred_check_branch
      %119 = sbr.rel (0) target = $region17
    $region16: #{tpu_custom_call.1} parent=1 // pred_region
      %s121 = ssub.s32 64, 64
      %122 = vsyncadd [#allocation4], %s121
      %s123 = sshll.u32 [#allocation5], 4
      %s124 = int_to_ptr.vmem [resolvable:$true] %s123
      %129 = dma.vmem_to_hbm [thread:$0]  %s124, 64, %s1, [#allocation4], 32, 32, 2
    $region17: #{tpu_custom_call.1} parent=1 // pred_fallthru
      _
    // Predicated region
    $region18: #{tpu_custom_call.1} parent=1 // pred_check
      _
    $region19: #{tpu_custom_call.1} parent=1 // pred_check_branch
      %131 = sbr.rel (0) target = $region21
    $region20: #{tpu_custom_call.1} parent=1 // pred_region
      %132 = dma.done [#allocation4], 64
    $region21: #{tpu_custom_call.1} parent=1 // pred_fallthru
      _
    %133 = vsyncpa [#allocation3], 1
    %134 = vsyncpa [#allocation4], 1

</llo_original>
